<compile_context>
chip_gen: v7x
topology: tpu7x:2x2x1
jax: 0.10.0
libtpu: 0.0.40
codegen_flags: <defaults>
</compile_context>

<pallas_src>
import jax
import jax.numpy as jnp
from jax.experimental import pallas as pl
from jax.experimental.pallas import tpu as pltpu


def spa_kernel(x_ref, w_ref, bias_ref, o_ref):
    # x_ref:    (TB, L, TC)  input tile, native dtype
    # w_ref:    (1, L, 1)    Linear weight (f32), lane-broadcastable
    # bias_ref: (1,)         Linear bias, SMEM scalar
    # o_ref:    (TB, TC)     output tile (lane-dense)
    x = x_ref[...].astype(jnp.float32)                    # (TB, L, TC)
    acc = jnp.sum(x * w_ref[...], axis=1) + bias_ref[0]   # (TB, TC), f32 accum
    o_ref[...] = acc.astype(o_ref.dtype)


def _round_up(v, m):
    return (v + m - 1) // m * m


def _choose_tiles(N, L, C, itemsize, x_budget, target_block):
    """Pick (tb, tc) from PADDED tile bytes so the double-buffered x tile fits
    x_budget while the per-step DMA lands near target_block.  Output blocks are
    kept (8,128)-friendly: tb is a multiple of 8 or the full leading dim."""
    sub = max(8, 32 // itemsize)           # sublane packing: f32->8, bf16->16, i8/fp8->32
    l_pad = _round_up(L, sub)

    if C <= 128:
        tc = C                              # full dim (pads to 128 lanes)
    else:
        # largest multiple-of-128 lane count s.t. 8 rows double-buffer in budget
        want = x_budget // (2 * min(8, N) * l_pad * itemsize)
        want = max(128, (want // 128) * 128)
        tc = C if want >= C else int(want)

    tc_pad = _round_up(tc, 128)
    row_bytes = l_pad * tc_pad * itemsize   # padded bytes per leading row of the x block

    tb = min(max(1, x_budget // (2 * row_bytes)),
             max(1, target_block // row_bytes), N)
    if tb >= N:
        tb = N
    else:
        tb = max(8, (tb // 8) * 8)          # sublane-dense output blocks
        if tb >= N:
            tb = N

    # v7x megacore: if both grid axes would collapse to one block, split the
    # leading axis (kept 8-aligned) so both TensorCores get a DMA stream.
    if tb >= N and pl.cdiv(C, tc) == 1 and N >= 16:
        tb = _round_up(pl.cdiv(N, 2), 8)

    block_bytes = tb * row_bytes
    return tb, tc, block_bytes


def spa_forward(x, weight, bias, *, r=3):
    """x: (B, O, C); weight: (1, L) with L = O // r; bias: (1,). Returns (B, r, C)."""
    B, O, C = x.shape
    L = O // r
    assert O == r * L, "sequence length must be divisible by r=3"
    assert weight.shape == (1, L)
    N = B * r

    xr = x.reshape(N, L, C)                 # zero-copy: x[b, ri*L+l, c] == xr[b*r+ri, l, c]
    itemsize = x.dtype.itemsize

    # Generation-aware VMEM budgeting (v5e/v6e: 128 MiB, v7x: 64 MiB per TC).
    try:
        vmem_cap = int(pltpu.get_tpu_info().vmem_capacity_bytes)
    except Exception:
        vmem_cap = 64 * 1024 * 1024         # conservative fallback
    x_budget = (16 << 20) if vmem_cap >= (96 << 20) else (8 << 20)
    target_block = 4 << 20                  # ~86%-of-roofline DMA block size
    vmem_limit = int(min(vmem_cap // 2, 64 << 20))

    tb, tc, block_bytes = _choose_tiles(N, L, C, itemsize, x_budget, target_block)
    grid = (pl.cdiv(N, tb), pl.cdiv(C, tc))

    # Tiny params: f32, shaped so the weight lane-broadcasts in-kernel.
    w3 = weight.astype(jnp.float32).reshape(1, L, 1)
    b1 = bias.astype(jnp.float32).reshape(1)

    # Deeper pipelining only when per-step blocks are small (latency-exposed).
    x_spec_kwargs = {}
    if block_bytes < (1 << 20) and grid[0] * grid[1] > 2 and hasattr(pl, "Buffered"):
        x_spec_kwargs = {"pipeline_mode": pl.Buffered(3)}
    try:
        x_spec = pl.BlockSpec((tb, L, tc), lambda i, j: (i, 0, j), **x_spec_kwargs)
    except TypeError:
        x_spec = pl.BlockSpec((tb, L, tc), lambda i, j: (i, 0, j))

    out = pl.pallas_call(
        spa_kernel,
        out_shape=jax.ShapeDtypeStruct((N, C), x.dtype),
        grid_spec=pltpu.PrefetchScalarGridSpec(
            num_scalar_prefetch=0,
            grid=grid,
            in_specs=[
                x_spec,                                               # streamed x tile
                pl.BlockSpec((1, L, 1), lambda i, j: (0, 0, 0)),      # resident weight
                pl.BlockSpec(memory_space=pltpu.MemorySpace.SMEM),    # scalar bias
            ],
            out_specs=pl.BlockSpec((tb, tc), lambda i, j: (i, j)),    # lane-dense slab
        ),
        compiler_params=pltpu.CompilerParams(
            dimension_semantics=("parallel", "parallel"),
            vmem_limit_bytes=vmem_limit),
        cost_estimate=pl.CostEstimate(
            flops=2 * N * L * C,
            transcendentals=0,
            bytes_accessed=N * L * C * itemsize + N * C * itemsize),
    )(xr, w3, b1)

    return out.reshape(B, r, C)             # zero-copy back to (B, r, C)


def spa_reference(x, weight, bias, *, r=3):
    """Pure-JAX reference mirroring the PyTorch forward."""
    B, O, C = x.shape
    L = O // r
    xr = x.reshape(B, r, L, C)                          # 'b (r l) c -> b r l c'
    xr = jnp.transpose(xr, (0, 3, 1, 2))                # -> b c r l
    y = jnp.einsum('bcrl,ol->bcro', xr, weight) + bias  # Linear(L -> 1)
    y = jnp.transpose(y, (0, 2, 3, 1))                  # b c r 1 -> b r 1 c
    return y.reshape(B, r * 1, C)                       # 'b c r l -> b (r l) c'


if __name__ == "__main__":
    key = jax.random.PRNGKey(0)

    for case_idx, (B, L, C) in enumerate([(2, 8, 32), (3, 8, 48)]):
        r = 3
        O = r * L
        k_x, k_w, k_b, key = jax.random.split(key, 4)

        x = jax.random.normal(k_x, (B, O, C), dtype=jnp.float32)
        # nn.Linear(inp=L, out=1): weight (1, L), bias (1,)
        bound = 1.0 / (L ** 0.5)
        weight = jax.random.uniform(k_w, (1, L), minval=-bound, maxval=bound,
                                    dtype=jnp.float32)
        bias = jax.random.uniform(k_b, (1,), minval=-bound, maxval=bound,
                                  dtype=jnp.float32)

        out = spa_forward(x, weight, bias, r=r)
        out = jax.block_until_ready(out)

        ref = spa_reference(x, weight, bias, r=r)
        assert out.shape == (B, r, C), out.shape
        assert jnp.allclose(out, ref, atol=1e-5, rtol=1e-5), \
            f"mismatch vs reference in case {case_idx}"

    print("KERNEL_OK")
</pallas_src>

<mosaic_0001>
module attributes {stable_mosaic.version = 11 : i64} {
  func.func @spa_kernel(%arg0: i32, %arg1: i32, %arg2: memref<6x8x32xf32, #tpu.memory_space<vmem>>, %arg3: memref<1x8x1xf32, #tpu.memory_space<vmem>>, %arg4: memref<1xf32, #tpu.memory_space<smem>>, %arg5: memref<6x32xf32, #tpu.memory_space<vmem>>) attributes {dimension_semantics = [#tpu.dimension_semantics<parallel>, #tpu.dimension_semantics<parallel>], iteration_bounds = array<i64: 1, 1>, scalar_prefetch = 0 : i64, scratch_operands = 0 : i64, tpu.core_type = #tpu.core_type<tc>, window_params = [{transform_indices = @transform_0, window_bounds = array<i64: 6, 8, 32>}, {pipeline_mode = #tpu.pipeline_mode<synchronous>, transform_indices = @transform_1, window_bounds = array<i64: 1, 8, 1>}, {transform_indices = @transform_2, window_bounds = array<i64: 1>}, {transform_indices = @transform_3, window_bounds = array<i64: 6, 32>}]} {
    %c0 = arith.constant 0 : index
    %c0_0 = arith.constant 0 : index
    %c0_1 = arith.constant 0 : index
    %0 = vector.load %arg2[%c0, %c0_0, %c0_1] : memref<6x8x32xf32, #tpu.memory_space<vmem>>, vector<6x8x32xf32>
    %c0_2 = arith.constant 0 : index
    %c0_3 = arith.constant 0 : index
    %c0_4 = arith.constant 0 : index
    %1 = vector.load %arg3[%c0_2, %c0_3, %c0_4] : memref<1x8x1xf32, #tpu.memory_space<vmem>>, vector<1x8x1xf32>
    %2 = vector.broadcast %1 : vector<1x8x1xf32> to vector<6x8x32xf32>
    %3 = arith.mulf %0, %2 : vector<6x8x32xf32>
    %cst = arith.constant dense<0.000000e+00> : vector<6x32xf32>
    %4 = vector.multi_reduction <add>, %3, %cst [1] : vector<6x8x32xf32> to vector<6x32xf32>
    %c0_5 = arith.constant 0 : index
    %5 = memref.load %arg4[%c0_5] : memref<1xf32, #tpu.memory_space<smem>>
    %6 = vector.broadcast %5 : f32 to vector<6x32xf32>
    %7 = arith.addf %4, %6 : vector<6x32xf32>
    %c0_6 = arith.constant 0 : index
    %c0_7 = arith.constant 0 : index
    %8 = vector.load %arg5[%c0_6, %c0_7] : memref<6x32xf32, #tpu.memory_space<vmem>>, vector<6x32xf32>
    tpu.vector_store %arg5[%c0_6, %c0_7], %7 {strides = array<i32>} : memref<6x32xf32, #tpu.memory_space<vmem>>, vector<6x32xf32>,
    return
  }
  func.func @transform_0(%arg0: i32, %arg1: i32) -> (i32, i32, i32) {
    %c0_i32 = arith.constant 0 : i32
    %c0_i32_0 = arith.constant 0 : i32
    return %arg0, %c0_i32, %arg1 : i32, i32, i32
  }
  func.func @transform_1(%arg0: i32, %arg1: i32) -> (i32, i32, i32) {
    %c0_i32 = arith.constant 0 : i32
    %c0_i32_0 = arith.constant 0 : i32
    %c0_i32_1 = arith.constant 0 : i32
    %c0_i32_2 = arith.constant 0 : i32
    return %c0_i32, %c0_i32_0, %c0_i32_1 : i32, i32, i32
  }
  func.func @transform_2(%arg0: i32, %arg1: i32) -> i32 {
    %c0_i32 = arith.constant 0 : i32
    %c0_i32_0 = arith.constant 0 : i32
    return %c0_i32 : i32
  }
  func.func @transform_3(%arg0: i32, %arg1: i32) -> (i32, i32) {
    %c0_i32 = arith.constant 0 : i32
    return %arg0, %arg1 : i32, i32
  }
}

</mosaic_0001>

<llo_original>
// kernel: tpu_custom_call.1
$region0: #{tpu_custom_call.1}
  #allocation0 [shape = 'u32[]', space=smem, size = 0x4, offset = 0x4, fixed_abs, tag = 'smem constant byte address 0x4 - core index']
  #allocation1 [shape = 'u32[144,128]{1,0:T(1,128)}', space=vmem, size = 0x12000, scoped, tag = 'internal scratch']
  #allocation2 [shape = 'f32[1]{0:T(128)S(6)}', space=smem, size = 0x200, scoped, tag = 'scoped memory for tpu_custom_call.1']
  %s0 = inlined_call_operand.hbm [shape: f32[6,8,32], index: 0, kind: input, shape index: {}]
  %s1 = inlined_call_operand.vmem [shape: f32[1,8,1], index: 1, kind: input, shape index: {}]
  %s2 = inlined_call_operand.<no memory space> [shape: f32[1], index: 2, kind: input, shape index: {}]
  %s3 = inlined_call_operand.hbm [shape: f32[6,32], index: 3, kind: output, shape index: {}]
  %s4 = sld [smem:[#allocation0]]
  $region26: #{tpu_custom_call.1} parent=0
    _
  %s6 = ssub.s32 1, %s4
  %s7 = scalar_select 0, %s6, %s4
  %8 = sst [smem:[#allocation2]] %s2
  $region1: #{tpu_custom_call.1} parent=0
    #allocation3 [shape = 'u8[24576]{0}', space=vmem, size = 0x6000, scoped, tag = 'input window, operand 0, single buffered']
    #allocation4 [shape = 's32[1]{0}', space=sflag, size = 0x4, scoped, tag = 'scoped memory for tpu_custom_call.1']
    #allocation5 [shape = 's32[1]{0}', space=sflag, size = 0x4, scoped, tag = 'scoped memory for tpu_custom_call.1']
    #allocation6 [shape = 'u8[4096]{0}', space=vmem, size = 0x1000, scoped, tag = 'output window, operand 0, single buffered']
    %9 = vsyncpa [#allocation4], 0
    %10 = vsyncpa [#allocation5], 0
    // Predicated region
    $region2: #{tpu_custom_call.1} parent=1 // pred_check
      _
    $region3: #{tpu_custom_call.1} parent=1 // pred_check_branch
      %12 = sbr.rel (0) target = $region5
    $region4: #{tpu_custom_call.1} parent=1 // pred_region
      %s14 = ssub.s32 768, 768
      %15 = vsyncadd [#allocation4], %s14
      %s16 = sshll.u32 [#allocation3], 4
      %s17 = int_to_ptr.vmem [resolvable:$true] %s16
      %22 = dma.hbm_to_vmem [thread:$0]  %s0, 768, %s17, [#allocation4], 128, 128, 8
    $region5: #{tpu_custom_call.1} parent=1 // pred_fallthru
      _
    // Predicated region
    $region6: #{tpu_custom_call.1} parent=1 // pred_check
      _
    $region7: #{tpu_custom_call.1} parent=1 // pred_check_branch
      %24 = sbr.rel (0) target = $region9
    $region8: #{tpu_custom_call.1} parent=1 // pred_region
      _
    $region9: #{tpu_custom_call.1} parent=1 // pred_fallthru
      _
    // Predicated region
    $region10: #{tpu_custom_call.1} parent=1 // pred_check
      _
    $region11: #{tpu_custom_call.1} parent=1 // pred_check_branch
      %26 = sbr.rel (0) target = $region13
    $region12: #{tpu_custom_call.1} parent=1 // pred_region
      _
    $region13: #{tpu_custom_call.1} parent=1 // pred_fallthru
      _
    // Predicated region
    $region14: #{tpu_custom_call.1} parent=1 // pred_check
      _
    $region15: #{tpu_custom_call.1} parent=1 // pred_check_branch
      %28 = sbr.rel (0) target = $region17
    $region16: #{tpu_custom_call.1} parent=1 // pred_region
      %29 = dma.done [#allocation4], 768
    $region17: #{tpu_custom_call.1} parent=1 // pred_fallthru
      _
    %v30 = vld [vmem:[#allocation3] sm:$0xff]
    %v31 = vld [vmem:[#allocation3 + $0x8] sm:$0xff]
    %v32 = vld [vmem:[#allocation3 + $0x10] sm:$0xff]
    %v33 = vld [vmem:[#allocation3 + $0x18] sm:$0xff]
    %v34 = vld [vmem:[#allocation3 + $0x20] sm:$0xff]
    %v35 = vld [vmem:[#allocation3 + $0x28] sm:$0xff]
    %v36 = vld [vmem:[%s1] sm:$0xff]
    %38 = vset.pattern.permute.xlu0 0
    %39 = vperm.xlu0 %38, %v36
    %v40 = vpop.permute.xlu0 %39
    %v42 = vmul.f32 %v30, %v40
    %v43 = vmul.f32 %v31, %v40
    %v44 = vmul.f32 %v32, %v40
    %v45 = vmul.f32 %v33, %v40
    %v46 = vmul.f32 %v34, %v40
    %v47 = vmul.f32 %v35, %v40
    %vm48 = vcmask 261120
    %v49 = vsel %vm48, %v42, 0.0
    %v50 = vrot.slane %v49, 4
    %v51 = vadd.f32 %v49, %v50
    %v52 = vrot.slane %v51, 2
    %v53 = vadd.f32 %v51, %v52
    %v54 = vrot.slane %v53, 1
    %v55 = vadd.f32 %v53, %v54
    %v56 = vsel %vm48, %v43, 0.0
    %v57 = vrot.slane %v56, 4
    %v58 = vadd.f32 %v56, %v57
    %v59 = vrot.slane %v58, 2
    %v60 = vadd.f32 %v58, %v59
    %v61 = vrot.slane %v60, 1
    %v62 = vadd.f32 %v60, %v61
    %v63 = vsel %vm48, %v44, 0.0
    %v64 = vrot.slane %v63, 4
    %v65 = vadd.f32 %v63, %v64
    %v66 = vrot.slane %v65, 2
    %v67 = vadd.f32 %v65, %v66
    %v68 = vrot.slane %v67, 1
    %v69 = vadd.f32 %v67, %v68
    %v70 = vsel %vm48, %v45, 0.0
    %v71 = vrot.slane %v70, 4
    %v72 = vadd.f32 %v70, %v71
    %v73 = vrot.slane %v72, 2
    %v74 = vadd.f32 %v72, %v73
    %v75 = vrot.slane %v74, 1
    %v76 = vadd.f32 %v74, %v75
    %v77 = vsel %vm48, %v46, 0.0
    %v78 = vrot.slane %v77, 4
    %v79 = vadd.f32 %v77, %v78
    %v80 = vrot.slane %v79, 2
    %v81 = vadd.f32 %v79, %v80
    %v82 = vrot.slane %v81, 1
    %v83 = vadd.f32 %v81, %v82
    %v84 = vsel %vm48, %v47, 0.0
    %v85 = vrot.slane %v84, 4
    %v86 = vadd.f32 %v84, %v85
    %v87 = vrot.slane %v86, 2
    %v88 = vadd.f32 %v86, %v87
    %v89 = vrot.slane %v88, 1
    %v90 = vadd.f32 %v88, %v89
    %s91 = sld [smem:[#allocation2]]
    %v92 = vstv %s91
    %v93 = vadd.f32 %v55, %v92
    %v94 = vadd.f32 %v62, %v92
    %v95 = vadd.f32 %v69, %v92
    %v96 = vadd.f32 %v76, %v92
    %v97 = vadd.f32 %v83, %v92
    %v98 = vadd.f32 %v90, %v92
    %vm105 = vcmask 1041409
    %v106 = vsel %vm105, %v94, %v93
    %vm107 = vcmask 1042434
    %v108 = vsel %vm107, %v95, %v106
    %vm109 = vcmask 1043459
    %v110 = vsel %vm109, %v96, %v108
    %vm111 = vcmask 1044484
    %v112 = vsel %vm111, %v97, %v110
    %vm113 = vcmask 1045509
    %v114 = vsel %vm113, %v98, %v112
    %vm116 = vcmask 259072
    %117 = vst.msk [vmem:[#allocation6] sm:$0x3f] %vm116, %v114
    // Predicated region
    $region18: #{tpu_custom_call.1} parent=1 // pred_check
      _
    $region19: #{tpu_custom_call.1} parent=1 // pred_check_branch
      %119 = sbr.rel (0) target = $region21
    $region20: #{tpu_custom_call.1} parent=1 // pred_region
      %s121 = ssub.s32 128, 128
      %122 = vsyncadd [#allocation5], %s121
      %s124 = sshll.u32 [#allocation6], 4
      %s125 = int_to_ptr.vmem [resolvable:$true] %s124
      %127 = dma.vmem_to_hbm [thread:$0]  %s125, 128, %s3, [#allocation5]
    $region21: #{tpu_custom_call.1} parent=1 // pred_fallthru
      _
    // Predicated region
    $region22: #{tpu_custom_call.1} parent=1 // pred_check
      _
    $region23: #{tpu_custom_call.1} parent=1 // pred_check_branch
      %129 = sbr.rel (0) target = $region25
    $region24: #{tpu_custom_call.1} parent=1 // pred_region
      %130 = dma.done [#allocation5], 128
    $region25: #{tpu_custom_call.1} parent=1 // pred_fallthru
      _
    %131 = vsyncpa [#allocation4], 1
    %132 = vsyncpa [#allocation5], 1

</llo_original>
